<compile_context>
chip_gen: v6e
topology: v6e:2x2x1
jax: 0.10.0
libtpu: 0.0.40
codegen_flags: <defaults>
</compile_context>

<pallas_src>
import math
import functools

import jax
import jax.numpy as jnp
from jax import lax
from jax.experimental import pallas as pl
from jax.experimental.pallas import tpu as pltpu


def _round_up(v, m):
    return (v + m - 1) // m * m


# Per-generation VMEM budget (~80% of physical capacity, capped):
#   v7x  (64 MiB physical)  -> ~51 MiB
#   v5e/v6e (128 MiB)       -> ~102 MiB
try:
    _VMEM_CAPACITY = int(pltpu.get_tpu_info().vmem_capacity_bytes)
except Exception:  # non-TPU / interpret fallback: assume the smallest (v7x)
    _VMEM_CAPACITY = 64 * 1024 * 1024
_VMEM_BUDGET = min(int(0.80 * _VMEM_CAPACITY), 112 * 1024 * 1024)


def _mlp_kernel(x_ref, w1_ref, b1_ref, w2_ref, b2_ref, o_ref, *, approximate):
    # x_ref:  (TN, INP)  f32      w1_ref: (INP, HIDP) bf16   b1_ref: (1, HIDP) f32
    # w2_ref: (HIDP, OUTP) bf16   b2_ref: (1, OUTP)   f32    o_ref:  (TN, OUTP) f32
    x = x_ref[...].astype(jnp.bfloat16)                          # MXU-native input
    h = jnp.dot(x, w1_ref[...], preferred_element_type=jnp.float32)
    # f32 bias + GELU; tanh formulation routes the transcendental to the EUP.
    h = jax.nn.gelu(h + b1_ref[...], approximate=approximate)
    # Dropout with p=0.0 (eval mode / module default) is the identity.
    # TODO(synk): training-mode dropout (p>0) would need pltpu.prng_random_bits.
    y = jnp.dot(h.astype(jnp.bfloat16), w2_ref[...],
                preferred_element_type=jnp.float32)
    o_ref[...] = (y + b2_ref[...]).astype(o_ref.dtype)


def prepare_mlp_params(w1, b1, w2, b2):
    """One-time weight preparation (pad to 128-lane multiples, cast to bf16).

    Call once per layer OUTSIDE the per-token hot path; pass the result to
    mlp_layer_apply.  Weights are (in, out) layout (transpose of nn.Linear's
    stored (out, in)).  Returns ((w1p, b1p, w2p, b2p), out_features).
    """
    in_f, hid = w1.shape
    hid2, out_f = w2.shape
    assert hid == hid2, "fc1/fc2 hidden dims disagree"
    in_p, hid_p, out_p = (_round_up(d, 128) for d in (in_f, hid, out_f))
    w1p = jnp.pad(w1, ((0, in_p - in_f), (0, hid_p - hid))).astype(jnp.bfloat16)
    w2p = jnp.pad(w2, ((0, hid_p - hid), (0, out_p - out_f))).astype(jnp.bfloat16)
    b1p = jnp.pad(b1, (0, hid_p - hid)).reshape(1, hid_p).astype(jnp.float32)
    b2p = jnp.pad(b2, (0, out_p - out_f)).reshape(1, out_p).astype(jnp.float32)
    return (w1p, b1p, w2p, b2p), out_f


def _resident_spec(shape):
    """BlockSpec for a grid-invariant operand (constant index_map): a single
    buffer suffices, halving its VMEM footprint vs the default double buffer."""
    idx = lambda i: (0, 0)
    if hasattr(pl, "Buffered"):
        try:
            return pl.BlockSpec(shape, idx, pipeline_mode=pl.Buffered(1))
        except TypeError:  # older BlockSpec without pipeline_mode kwarg
            pass
    return pl.BlockSpec(shape, idx)


@functools.partial(jax.jit,
                   static_argnames=("out_features", "tile_n", "exact_gelu"))
def mlp_layer_apply(x, w1p, b1p, w2p, b2p, *, out_features, tile_n=512,
                    exact_gelu=False):
    """Fused fc1 -> GELU -> fc2 on pre-prepared (lane-padded bf16) weights."""
    in_features = x.shape[-1]
    in_p, hid_p = w1p.shape
    out_p = w2p.shape[1]
    lead = x.shape[:-1]
    n = int(math.prod(lead)) if lead else 1

    x2 = x.reshape(n, in_features)
    if in_p != in_features:
        # Padding columns hit the matmul reduction, so they must be real zeros.
        # Only non-lane-aligned in_features pay this extra copy.
        x2 = jnp.pad(x2, ((0, 0), (0, in_p - in_features)))

    x_bytes = jnp.dtype(x.dtype).itemsize

    def vmem_estimate(t):
        resident = (in_p * hid_p + hid_p * out_p) * 2 + (hid_p + out_p) * 4
        streams = 2 * t * in_p * x_bytes + 2 * t * out_p * 4   # dbl-buffered x / out
        interm = t * in_p * 2 + t * hid_p * (4 + 2)            # bf16 x, f32+bf16 hidden
        return resident + streams + interm

    # Row tile: as large as the VMEM budget allows, multiple of 8, never larger
    # than the (rounded-up) N, never below 128 rows (MXU tile height).
    tile = max(8, _round_up(min(int(tile_n), _round_up(max(n, 1), 8)), 8))
    min_tile = min(128, _round_up(max(n, 1), 8))
    while vmem_estimate(tile) > _VMEM_BUDGET and tile > min_tile:
        tile = max(min_tile, _round_up(tile // 2, 8))
    # TODO(synk): if resident weights alone exceed the budget (huge hidden dim),
    # add a K-tiled grid axis with an f32 accumulator scratch instead of
    # shrinking the row tile further.

    grid_len = pl.cdiv(n, tile)
    if grid_len > 1 and grid_len % 2 == 1:
        # v7x megacore: prefer an even step count so neither TensorCore idles.
        cand = max(min_tile, _round_up(pl.cdiv(n, grid_len + 1), 8))
        if pl.cdiv(n, cand) % 2 == 0:
            tile = cand
            grid_len = pl.cdiv(n, cand)

    kernel = functools.partial(_mlp_kernel, approximate=not exact_gelu)

    out = pl.pallas_call(
        kernel,
        out_shape=jax.ShapeDtypeStruct((n, out_p), x.dtype),
        grid_spec=pltpu.PrefetchScalarGridSpec(
            num_scalar_prefetch=0,
            grid=(grid_len,),
            in_specs=[
                pl.BlockSpec((tile, in_p), lambda i: (i, 0)),
                _resident_spec((in_p, hid_p)),    # w1 (resident, 1 buffer)
                _resident_spec((1, hid_p)),       # b1
                _resident_spec((hid_p, out_p)),   # w2 (resident, 1 buffer)
                _resident_spec((1, out_p)),       # b2
            ],
            out_specs=pl.BlockSpec((tile, out_p), lambda i: (i, 0)),
        ),
        compiler_params=pltpu.CompilerParams(
            dimension_semantics=("parallel",),
            vmem_limit_bytes=int(_VMEM_BUDGET),
        ),
    )(x2, w1p, b1p, w2p, b2p)

    if out_p != out_features:
        out = out[:, :out_features]
    return out.reshape(*lead, out_features)


def mlp_layer(x, w1, b1, w2, b2, *, tile_n=512, exact_gelu=False):
    """Convenience wrapper (prepares weights on every call).  For repeated use
    call prepare_mlp_params once and mlp_layer_apply per step instead."""
    (w1p, b1p, w2p, b2p), out_f = prepare_mlp_params(w1, b1, w2, b2)
    return mlp_layer_apply(x, w1p, b1p, w2p, b2p, out_features=out_f,
                           tile_n=tile_n, exact_gelu=exact_gelu)


# ----------------------------- references ---------------------------------- #

def _reference_like_kernel(x, w1, b1, w2, b2, approximate=True):
    # Mirrors the kernel numerics (bf16 MXU inputs, f32 accumulation, tanh GELU)
    # so the comparison tolerance can stay tight.
    h = jnp.dot(x.astype(jnp.bfloat16), w1.astype(jnp.bfloat16),
                preferred_element_type=jnp.float32) + b1
    h = jax.nn.gelu(h, approximate=approximate)
    return jnp.dot(h.astype(jnp.bfloat16), w2.astype(jnp.bfloat16),
                   preferred_element_type=jnp.float32) + b2


def _reference_f32_exact(x, w1, b1, w2, b2):
    # Pure-f32 exact-erf GELU: numerically equivalent to the PyTorch module.
    h = x @ w1 + b1
    h = 0.5 * h * (1.0 + lax.erf(h * (1.0 / math.sqrt(2.0))))
    return h @ w2 + b2


if __name__ == "__main__":
    # Shapes implied by MLPLayer applied to a (batch, seq, in_features) tensor.
    batch, seq = 2, 8
    in_features, hidden_features, out_features = 32, 64, 32

    key = jax.random.PRNGKey(0)
    kx, k1, k2, k3, k4 = jax.random.split(key, 5)

    x = jax.random.normal(kx, (batch, seq, in_features), dtype=jnp.float32)
    # nn.Linear stores weight as (out, in); we keep (in, out) and compute x @ W.
    w1 = jax.random.normal(k1, (in_features, hidden_features), jnp.float32) * 0.05
    b1 = jax.random.normal(k2, (hidden_features,), jnp.float32) * 0.05
    w2 = jax.random.normal(k3, (hidden_features, out_features), jnp.float32) * 0.05
    b2 = jax.random.normal(k4, (out_features,), jnp.float32) * 0.05

    # Hot-path usage: prepare weights once, apply many times.
    params, out_f = prepare_mlp_params(w1, b1, w2, b2)
    y = mlp_layer_apply(x, *params, out_features=out_f)
    y = jax.block_until_ready(y)
    assert y.shape == (batch, seq, out_features)

    x_flat = x.reshape(-1, in_features)
    y_mirror = _reference_like_kernel(x_flat, w1, b1, w2, b2).reshape(y.shape)
    y_exact = _reference_f32_exact(x_flat, w1, b1, w2, b2).reshape(y.shape)

    # Tight check vs a reference mirroring the kernel numerics, loose check vs
    # the pure-f32 exact-erf PyTorch-equivalent math.
    assert jnp.allclose(y, y_mirror, atol=5e-3, rtol=5e-3), "mismatch vs mirrored ref"
    assert jnp.allclose(y, y_exact, atol=3e-2, rtol=3e-2), "mismatch vs f32 exact ref"

    # Convenience wrapper (weight prep inside the call) must agree exactly.
    y_conv = jax.block_until_ready(mlp_layer(x, w1, b1, w2, b2))
    assert jnp.allclose(y, y_conv), "convenience wrapper mismatch"

    print("KERNEL_OK")
</pallas_src>

<mosaic_0001>
module attributes {stable_mosaic.version = 11 : i64} {
  func.func @_mlp_kernel(%arg0: i32, %arg1: memref<16x128xf32, #tpu.memory_space<vmem>>, %arg2: memref<128x128xbf16, #tpu.memory_space<vmem>>, %arg3: memref<1x128xf32, #tpu.memory_space<vmem>>, %arg4: memref<128x128xbf16, #tpu.memory_space<vmem>>, %arg5: memref<1x128xf32, #tpu.memory_space<vmem>>, %arg6: memref<16x128xf32, #tpu.memory_space<vmem>>) attributes {dimension_semantics = [#tpu.dimension_semantics<parallel>], iteration_bounds = array<i64: 1>, scalar_prefetch = 0 : i64, scratch_operands = 0 : i64, tpu.core_type = #tpu.core_type<tc>, window_params = [{transform_indices = @transform_0, window_bounds = array<i64: 16, 128>}, {pipeline_mode = #tpu.pipeline_mode<synchronous>, transform_indices = @transform_1, window_bounds = array<i64: 128, 128>}, {pipeline_mode = #tpu.pipeline_mode<synchronous>, transform_indices = @transform_2, window_bounds = array<i64: 1, 128>}, {pipeline_mode = #tpu.pipeline_mode<synchronous>, transform_indices = @transform_3, window_bounds = array<i64: 128, 128>}, {pipeline_mode = #tpu.pipeline_mode<synchronous>, transform_indices = @transform_4, window_bounds = array<i64: 1, 128>}, {transform_indices = @transform_5, window_bounds = array<i64: 16, 128>}]} {
    %c0 = arith.constant 0 : index
    %c0_0 = arith.constant 0 : index
    %0 = vector.load %arg1[%c0, %c0_0] : memref<16x128xf32, #tpu.memory_space<vmem>>, vector<16x128xf32>
    %1 = arith.truncf %0 : vector<16x128xf32> to vector<16x128xbf16>
    %c0_1 = arith.constant 0 : index
    %c0_2 = arith.constant 0 : index
    %2 = vector.load %arg2[%c0_1, %c0_2] : memref<128x128xbf16, #tpu.memory_space<vmem>>, vector<128x128xbf16>
    %cst = arith.constant dense<0.000000e+00> : vector<16x128xf32>
    %3 = tpu.matmul %1, %2, %cst {dimension_numbers = #tpu.dot_dimension_numbers<[1], [0], [0], [1], [0, 0, 1, 1], [], []>} : vector<16x128xbf16>, vector<128x128xbf16>, vector<16x128xf32> -> vector<16x128xf32>
    %c0_3 = arith.constant 0 : index
    %c0_4 = arith.constant 0 : index
    %4 = vector.load %arg3[%c0_3, %c0_4] : memref<1x128xf32, #tpu.memory_space<vmem>>, vector<1x128xf32>
    %5 = vector.broadcast %4 : vector<1x128xf32> to vector<16x128xf32>
    %6 = arith.addf %3, %5 : vector<16x128xf32>
    %7 = arith.mulf %6, %6 : vector<16x128xf32>
    %8 = arith.mulf %6, %7 : vector<16x128xf32>
    %cst_5 = arith.constant 4.471500e-02 : f32
    %9 = vector.broadcast %cst_5 : f32 to vector<16x128xf32>
    %10 = arith.mulf %9, %8 : vector<16x128xf32>
    %11 = arith.addf %6, %10 : vector<16x128xf32>
    %cst_6 = arith.constant 0.797884583 : f32
    %12 = vector.broadcast %cst_6 : f32 to vector<16x128xf32>
    %13 = arith.mulf %12, %11 : vector<16x128xf32>
    %14 = math.tanh %13 : vector<16x128xf32>
    %cst_7 = arith.constant 1.000000e+00 : f32
    %15 = vector.broadcast %cst_7 : f32 to vector<16x128xf32>
    %16 = arith.addf %15, %14 : vector<16x128xf32>
    %cst_8 = arith.constant 5.000000e-01 : f32
    %17 = vector.broadcast %cst_8 : f32 to vector<16x128xf32>
    %18 = arith.mulf %17, %16 : vector<16x128xf32>
    %19 = arith.mulf %6, %18 : vector<16x128xf32>
    %20 = arith.truncf %19 : vector<16x128xf32> to vector<16x128xbf16>
    %c0_9 = arith.constant 0 : index
    %c0_10 = arith.constant 0 : index
    %21 = vector.load %arg4[%c0_9, %c0_10] : memref<128x128xbf16, #tpu.memory_space<vmem>>, vector<128x128xbf16>
    %cst_11 = arith.constant dense<0.000000e+00> : vector<16x128xf32>
    %22 = tpu.matmul %20, %21, %cst_11 {dimension_numbers = #tpu.dot_dimension_numbers<[1], [0], [0], [1], [0, 0, 1, 1], [], []>} : vector<16x128xbf16>, vector<128x128xbf16>, vector<16x128xf32> -> vector<16x128xf32>
    %c0_12 = arith.constant 0 : index
    %c0_13 = arith.constant 0 : index
    %23 = vector.load %arg5[%c0_12, %c0_13] : memref<1x128xf32, #tpu.memory_space<vmem>>, vector<1x128xf32>
    %24 = vector.broadcast %23 : vector<1x128xf32> to vector<16x128xf32>
    %25 = arith.addf %22, %24 : vector<16x128xf32>
    %c0_14 = arith.constant 0 : index
    %c0_15 = arith.constant 0 : index
    %26 = vector.load %arg6[%c0_14, %c0_15] : memref<16x128xf32, #tpu.memory_space<vmem>>, vector<16x128xf32>
    tpu.vector_store %arg6[%c0_14, %c0_15], %25 {strides = array<i32>} : memref<16x128xf32, #tpu.memory_space<vmem>>, vector<16x128xf32>,
    return
  }
  func.func @transform_0(%arg0: i32) -> (i32, i32) {
    %c0_i32 = arith.constant 0 : i32
    %c0_i32_0 = arith.constant 0 : i32
    return %arg0, %c0_i32 : i32, i32
  }
  func.func @transform_1(%arg0: i32) -> (i32, i32) {
    %c0_i32 = arith.constant 0 : i32
    %c0_i32_0 = arith.constant 0 : i32
    %c0_i32_1 = arith.constant 0 : i32
    return %c0_i32, %c0_i32_0 : i32, i32
  }
  func.func @transform_2(%arg0: i32) -> (i32, i32) {
    %c0_i32 = arith.constant 0 : i32
    %c0_i32_0 = arith.constant 0 : i32
    %c0_i32_1 = arith.constant 0 : i32
    return %c0_i32, %c0_i32_0 : i32, i32
  }
  func.func @transform_3(%arg0: i32) -> (i32, i32) {
    %c0_i32 = arith.constant 0 : i32
    %c0_i32_0 = arith.constant 0 : i32
    %c0_i32_1 = arith.constant 0 : i32
    return %c0_i32, %c0_i32_0 : i32, i32
  }
  func.func @transform_4(%arg0: i32) -> (i32, i32) {
    %c0_i32 = arith.constant 0 : i32
    %c0_i32_0 = arith.constant 0 : i32
    %c0_i32_1 = arith.constant 0 : i32
    return %c0_i32, %c0_i32_0 : i32, i32
  }
  func.func @transform_5(%arg0: i32) -> (i32, i32) {
    %c0_i32 = arith.constant 0 : i32
    %c0_i32_0 = arith.constant 0 : i32
    return %arg0, %c0_i32 : i32, i32
  }
}

</mosaic_0001>

<llo_original>
// kernel: mlp_layer_apply.1
$region0: #{mlp_layer_apply.1}
  #allocation0 [shape = 'u32[]', space=smem, size = 0x4, offset = 0x4, fixed_abs, tag = 'smem constant byte address 0x4 - core index']
  #allocation1 [shape = 'u32[144,128]{1,0:T(1,128)}', space=vmem, size = 0x12000, scoped, tag = 'internal scratch']
  %s0 = inlined_call_operand.vmem [shape: f32[16,128], index: 0, kind: input, shape index: {}]
  %s1 = inlined_call_operand.hbm [shape: bf16[128,128], index: 1, kind: input, shape index: {}]
  %s2 = inlined_call_operand.vmem [shape: f32[1,128], index: 2, kind: input, shape index: {}]
  %s3 = inlined_call_operand.hbm [shape: bf16[128,128], index: 3, kind: input, shape index: {}]
  %s4 = inlined_call_operand.vmem [shape: f32[1,128], index: 4, kind: input, shape index: {}]
  %s5 = inlined_call_operand.vmem [shape: f32[16,128], index: 5, kind: output, shape index: {}]
  %s6 = sld [smem:[#allocation0]]
  $region38: #{mlp_layer_apply.1} parent=0
    _
  %s8 = ssub.s32 1, %s6
  %s9 = scalar_select 0, %s8, %s6
  $region1: #{mlp_layer_apply.1} parent=0
    #allocation2 [shape = 'u8[32768]{0}', space=vmem, size = 0x8000, scoped, tag = 'input window, operand 1, single buffered']
    #allocation3 [shape = 's32[1]{0}', space=sflag, size = 0x4, scoped, tag = 'scoped memory for mlp_layer_apply.1']
    #allocation4 [shape = 'u8[32768]{0}', space=vmem, size = 0x8000, scoped, tag = 'input window, operand 3, single buffered']
    #allocation5 [shape = 's32[1]{0}', space=sflag, size = 0x4, scoped, tag = 'scoped memory for mlp_layer_apply.1']
    %10 = vsyncpa [#allocation3], 0
    %11 = vsyncpa [#allocation5], 0
    // Predicated region
    $region2: #{mlp_layer_apply.1} parent=1 // pred_check
      _
    $region3: #{mlp_layer_apply.1} parent=1 // pred_check_branch
      %13 = sbr.rel (0) target = $region5
    $region4: #{mlp_layer_apply.1} parent=1 // pred_region
      _
    $region5: #{mlp_layer_apply.1} parent=1 // pred_fallthru
      _
    // Predicated region
    $region6: #{mlp_layer_apply.1} parent=1 // pred_check
      _
    $region7: #{mlp_layer_apply.1} parent=1 // pred_check_branch
      %15 = sbr.rel (0) target = $region9
    $region8: #{mlp_layer_apply.1} parent=1 // pred_region
      %s17 = ssub.s32 1024, 1024
      %18 = vsyncadd [#allocation3], %s17
      %s19 = sshll.u32 [#allocation2], 4
      %s20 = int_to_ptr.vmem [resolvable:$true] %s19
      %25 = dma.hbm_to_vmem [thread:$0]  %s1, 1024, %s20, [#allocation3], 64, 64, 4
    $region9: #{mlp_layer_apply.1} parent=1 // pred_fallthru
      _
    // Predicated region
    $region10: #{mlp_layer_apply.1} parent=1 // pred_check
      _
    $region11: #{mlp_layer_apply.1} parent=1 // pred_check_branch
      %27 = sbr.rel (0) target = $region13
    $region12: #{mlp_layer_apply.1} parent=1 // pred_region
      _
    $region13: #{mlp_layer_apply.1} parent=1 // pred_fallthru
      _
    // Predicated region
    $region14: #{mlp_layer_apply.1} parent=1 // pred_check
      _
    $region15: #{mlp_layer_apply.1} parent=1 // pred_check_branch
      %29 = sbr.rel (0) target = $region17
    $region16: #{mlp_layer_apply.1} parent=1 // pred_region
      %s31 = ssub.s32 1024, 1024
      %32 = vsyncadd [#allocation5], %s31
      %s33 = sshll.u32 [#allocation4], 4
      %s34 = int_to_ptr.vmem [resolvable:$true] %s33
      %39 = dma.hbm_to_vmem [thread:$0]  %s3, 1024, %s34, [#allocation5], 64, 64, 4
    $region17: #{mlp_layer_apply.1} parent=1 // pred_fallthru
      _
    // Predicated region
    $region18: #{mlp_layer_apply.1} parent=1 // pred_check
      _
    $region19: #{mlp_layer_apply.1} parent=1 // pred_check_branch
      %41 = sbr.rel (0) target = $region21
    $region20: #{mlp_layer_apply.1} parent=1 // pred_region
      _
    $region21: #{mlp_layer_apply.1} parent=1 // pred_fallthru
      _
    // Predicated region
    $region22: #{mlp_layer_apply.1} parent=1 // pred_check
      _
    $region23: #{mlp_layer_apply.1} parent=1 // pred_check_branch
      %43 = sbr.rel (0) target = $region25
    $region24: #{mlp_layer_apply.1} parent=1 // pred_region
      %44 = dma.done [#allocation3], 1024
    $region25: #{mlp_layer_apply.1} parent=1 // pred_fallthru
      _
    // Predicated region
    $region26: #{mlp_layer_apply.1} parent=1 // pred_check
      _
    $region27: #{mlp_layer_apply.1} parent=1 // pred_check_branch
      %46 = sbr.rel (0) target = $region29
    $region28: #{mlp_layer_apply.1} parent=1 // pred_region
      %47 = dma.done [#allocation5], 1024
    $region29: #{mlp_layer_apply.1} parent=1 // pred_fallthru
      _
    %v49 = vld [vmem:[%s0] sm:$0xff]
    %v50 = vld [vmem:[%s0 + $0x8] sm:$0xff]
    %v51 = vpack.c.bf16 %v50, %v49
    %v52 = vld [vmem:[#allocation2] sm:$0xf]
    %v53 = vld [vmem:[#allocation2 + $0x4] sm:$0xf]
    %v54 = vld [vmem:[#allocation2 + $0x8] sm:$0xf]
    %v55 = vld [vmem:[#allocation2 + $0xc] sm:$0xf]
    %v56 = vld [vmem:[#allocation2 + $0x10] sm:$0xf]
    %v57 = vld [vmem:[#allocation2 + $0x14] sm:$0xf]
    %v58 = vld [vmem:[#allocation2 + $0x18] sm:$0xf]
    %v59 = vld [vmem:[#allocation2 + $0x1c] sm:$0xf]
    %v60 = vld [vmem:[#allocation2 + $0x20] sm:$0xf]
    %v61 = vld [vmem:[#allocation2 + $0x24] sm:$0xf]
    %v62 = vld [vmem:[#allocation2 + $0x28] sm:$0xf]
    %v63 = vld [vmem:[#allocation2 + $0x2c] sm:$0xf]
    %v64 = vld [vmem:[#allocation2 + $0x30] sm:$0xf]
    %v65 = vld [vmem:[#allocation2 + $0x34] sm:$0xf]
    %v66 = vld [vmem:[#allocation2 + $0x38] sm:$0xf]
    %v67 = vld [vmem:[#allocation2 + $0x3c] sm:$0xf]
    %v68 = vld [vmem:[%s2] sm:$0x1]
    %v70 = vlaneseq
    %v71 = vshrl.u32 %v70, 7
    %v72 = vsub.s32 0, %v71
    %v73 = vrot.slane %v68, %v72
    %v91 = vunpack.c.l.b16 %v52
    %v92 = vunpack.c.l.b16 %v53
    %v93 = vunpack.c.l.b16 %v54
    %v94 = vunpack.c.l.b16 %v55
    %v95 = vunpack.c.l.b16 %v56
    %v96 = vunpack.c.l.b16 %v57
    %v97 = vunpack.c.l.b16 %v58
    %v98 = vunpack.c.l.b16 %v59
    %v99 = vunpack.c.l.b16 %v60
    %v100 = vunpack.c.l.b16 %v61
    %v101 = vunpack.c.l.b16 %v62
    %v102 = vunpack.c.l.b16 %v63
    %v103 = vunpack.c.l.b16 %v64
    %v104 = vunpack.c.l.b16 %v65
    %v105 = vunpack.c.l.b16 %v66
    %v106 = vunpack.c.l.b16 %v67
    %v107 = vpack.c.b16 %v92, %v91
    %v108 = vpack.c.b16 %v94, %v93
    %v109 = vpack.c.b16 %v96, %v95
    %v110 = vpack.c.b16 %v98, %v97
    %v111 = vpack.c.b16 %v100, %v99
    %v112 = vpack.c.b16 %v102, %v101
    %v113 = vpack.c.b16 %v104, %v103
    %v114 = vpack.c.b16 %v106, %v105
    %123 = vmatprep.subr.bf16.mxu0 0
    %124 = vmatpush1.bf16.msra.mxu0 %v114
    %125 = vmatprep.subr.bf16.mxu0 0
    %126 = vmatpush1.bf16.msra.mxu0 %v113
    %127 = vmatprep.subr.bf16.mxu0 0
    %128 = vmatpush1.bf16.msra.mxu0 %v112
    %129 = vmatprep.subr.bf16.mxu0 0
    %130 = vmatpush1.bf16.msra.mxu0 %v111
    %131 = vmatprep.subr.bf16.mxu0 0
    %132 = vmatpush1.bf16.msra.mxu0 %v110
    %133 = vmatprep.subr.bf16.mxu0 0
    %134 = vmatpush1.bf16.msra.mxu0 %v109
    %135 = vmatprep.subr.bf16.mxu0 0
    %136 = vmatpush1.bf16.msra.mxu0 %v108
    %137 = vmatprep.subr.bf16.mxu0 0
    %138 = vmatpush1.bf16.msra.mxu0 %v107
    %139 = vmatprep.subr.bf16.mxu0 0
    %140 = vmatpush2.bf16.msra.mxu0 0
    %141 = vmatprep.subr.bf16.mxu0 0
    %142 = vmatpush2.bf16.msra.mxu0 0
    %143 = vmatprep.subr.bf16.mxu0 0
    %144 = vmatpush2.bf16.msra.mxu0 0
    %145 = vmatprep.subr.bf16.mxu0 0
    %146 = vmatpush2.bf16.msra.mxu0 0
    %147 = vmatprep.subr.bf16.mxu0 0
    %148 = vmatpush2.bf16.msra.mxu0 0
    %149 = vmatprep.subr.bf16.mxu0 0
    %150 = vmatpush2.bf16.msra.mxu0 0
    %151 = vmatprep.subr.bf16.mxu0 0
    %152 = vmatpush2.bf16.msra.mxu0 0
    %153 = vmatprep.subr.bf16.mxu0 0
    %154 = vmatpush2.bf16.msra.mxu0 0
    %155 = vmatprep.mubr.bf16.mxu0 0
    %156 = vmatmul.mubr.bf16.gmra.mxu0 %v51
    %v157 = vpop.f32.mrf.mxu0
    %v158 = vadd.f32 %v73, %v157
    %v159 = vpop.f32.mrf.mxu0
    %v160 = vpop.f32.mrf.mxu0
    %v161 = vadd.f32 %v73, %v160
    %v162 = vpop.f32.mrf.mxu0
    %163 = vdwg.mxu0
    %v164 = vmul.f32 %v158, %v158
    %v165 = vmul.f32 %v161, %v161
    %v166 = vmul.f32 %v158, %v164
    %v167 = vmul.f32 %v161, %v165
    %v168 = vmul.f32 %v166, 0.044715
    %v169 = vmul.f32 %v167, 0.044715
    %v170 = vadd.f32 %v158, %v168
    %v171 = vadd.f32 %v161, %v169
    %v172 = vmul.f32 %v170, 0.7978846
    %v173 = vmul.f32 %v171, 0.7978846
    %v174 = vtanh.pop %v172
    %v175 = vtanh.pop %v173
    %v176 = vadd.f32 %v174, 1.0
    %v177 = vadd.f32 %v175, 1.0
    %v178 = vmul.f32 %v176, 0.5
    %v179 = vmul.f32 %v177, 0.5
    %v180 = vmul.f32 %v158, %v178
    %v181 = vmul.f32 %v161, %v179
    %v182 = vpack.c.bf16 %v181, %v180
    %v183 = vld [vmem:[#allocation4] sm:$0xf]
    %v184 = vld [vmem:[#allocation4 + $0x4] sm:$0xf]
    %v185 = vld [vmem:[#allocation4 + $0x8] sm:$0xf]
    %v186 = vld [vmem:[#allocation4 + $0xc] sm:$0xf]
    %v187 = vld [vmem:[#allocation4 + $0x10] sm:$0xf]
    %v188 = vld [vmem:[#allocation4 + $0x14] sm:$0xf]
    %v189 = vld [vmem:[#allocation4 + $0x18] sm:$0xf]
    %v190 = vld [vmem:[#allocation4 + $0x1c] sm:$0xf]
    %v191 = vld [vmem:[#allocation4 + $0x20] sm:$0xf]
    %v192 = vld [vmem:[#allocation4 + $0x24] sm:$0xf]
    %v193 = vld [vmem:[#allocation4 + $0x28] sm:$0xf]
    %v194 = vld [vmem:[#allocation4 + $0x2c] sm:$0xf]
    %v195 = vld [vmem:[#allocation4 + $0x30] sm:$0xf]
    %v196 = vld [vmem:[#allocation4 + $0x34] sm:$0xf]
    %v197 = vld [vmem:[#allocation4 + $0x38] sm:$0xf]
    %v198 = vld [vmem:[#allocation4 + $0x3c] sm:$0xf]
    %v199 = vld [vmem:[%s4] sm:$0x1]
    %v201 = vlaneseq
    %v202 = vshrl.u32 %v201, 7
    %v203 = vsub.s32 0, %v202
    %v204 = vrot.slane %v199, %v203
    %v222 = vunpack.c.l.b16 %v183
    %v223 = vunpack.c.l.b16 %v184
    %v224 = vunpack.c.l.b16 %v185
    %v225 = vunpack.c.l.b16 %v186
    %v226 = vunpack.c.l.b16 %v187
    %v227 = vunpack.c.l.b16 %v188
    %v228 = vunpack.c.l.b16 %v189
    %v229 = vunpack.c.l.b16 %v190
    %v230 = vunpack.c.l.b16 %v191
    %v231 = vunpack.c.l.b16 %v192
    %v232 = vunpack.c.l.b16 %v193
    %v233 = vunpack.c.l.b16 %v194
    %v234 = vunpack.c.l.b16 %v195
    %v235 = vunpack.c.l.b16 %v196
    %v236 = vunpack.c.l.b16 %v197
    %v237 = vunpack.c.l.b16 %v198
    %v238 = vpack.c.b16 %v223, %v222
    %v239 = vpack.c.b16 %v225, %v224
    %v240 = vpack.c.b16 %v227, %v226
    %v241 = vpack.c.b16 %v229, %v228
    %v242 = vpack.c.b16 %v231, %v230
    %v243 = vpack.c.b16 %v233, %v232
    %v244 = vpack.c.b16 %v235, %v234
    %v245 = vpack.c.b16 %v237, %v236
    %254 = vmatprep.subr.bf16.mxu0 0
    %255 = vmatpush1.bf16.msra.mxu0 %v245
    %256 = vmatprep.subr.bf16.mxu0 0
    %257 = vmatpush1.bf16.msra.mxu0 %v244
    %258 = vmatprep.subr.bf16.mxu0 0
    %259 = vmatpush1.bf16.msra.mxu0 %v243
    %260 = vmatprep.subr.bf16.mxu0 0
    %261 = vmatpush1.bf16.msra.mxu0 %v242
    %262 = vmatprep.subr.bf16.mxu0 0
    %263 = vmatpush1.bf16.msra.mxu0 %v241
    %264 = vmatprep.subr.bf16.mxu0 0
    %265 = vmatpush1.bf16.msra.mxu0 %v240
    %266 = vmatprep.subr.bf16.mxu0 0
    %267 = vmatpush1.bf16.msra.mxu0 %v239
    %268 = vmatprep.subr.bf16.mxu0 0
    %269 = vmatpush1.bf16.msra.mxu0 %v238
    %270 = vmatprep.subr.bf16.mxu0 0
    %271 = vmatpush2.bf16.msra.mxu0 0
    %272 = vmatprep.subr.bf16.mxu0 0
    %273 = vmatpush2.bf16.msra.mxu0 0
    %274 = vmatprep.subr.bf16.mxu0 0
    %275 = vmatpush2.bf16.msra.mxu0 0
    %276 = vmatprep.subr.bf16.mxu0 0
    %277 = vmatpush2.bf16.msra.mxu0 0
    %278 = vmatprep.subr.bf16.mxu0 0
    %279 = vmatpush2.bf16.msra.mxu0 0
    %280 = vmatprep.subr.bf16.mxu0 0
    %281 = vmatpush2.bf16.msra.mxu0 0
    %282 = vmatprep.subr.bf16.mxu0 0
    %283 = vmatpush2.bf16.msra.mxu0 0
    %284 = vmatprep.subr.bf16.mxu0 0
    %285 = vmatpush2.bf16.msra.mxu0 0
    %286 = vmatprep.mubr.bf16.mxu0 0
    %287 = vmatmul.mubr.bf16.gmra.mxu0 %v182
    %v288 = vpop.f32.mrf.mxu0
    %v289 = vadd.f32 %v204, %v288
    %v290 = vpop.f32.mrf.mxu0
    %v291 = vpop.f32.mrf.mxu0
    %v292 = vadd.f32 %v204, %v291
    %v293 = vpop.f32.mrf.mxu0
    %294 = vdwg.mxu0
    %295 = vst [vmem:[%s5] sm:$0xff] %v289
    %296 = vst [vmem:[%s5 + $0x8] sm:$0xff] %v292
    // Predicated region
    $region30: #{mlp_layer_apply.1} parent=1 // pred_check
      _
    $region31: #{mlp_layer_apply.1} parent=1 // pred_check_branch
      %298 = sbr.rel (0) target = $region33
    $region32: #{mlp_layer_apply.1} parent=1 // pred_region
      _
    $region33: #{mlp_layer_apply.1} parent=1 // pred_fallthru
      _
    // Predicated region
    $region34: #{mlp_layer_apply.1} parent=1 // pred_check
      _
    $region35: #{mlp_layer_apply.1} parent=1 // pred_check_branch
      %300 = sbr.rel (0) target = $region37
    $region36: #{mlp_layer_apply.1} parent=1 // pred_region
      _
    $region37: #{mlp_layer_apply.1} parent=1 // pred_fallthru
      _
    %301 = vsyncpa [#allocation3], 1
    %302 = vsyncpa [#allocation5], 1

</llo_original>
